<compile_context>
chip_gen: v7x
topology: tpu7x:2x2x1
jax: 0.10.0
libtpu: 0.0.40
codegen_flags: <defaults>
</compile_context>

<pallas_src>
from functools import partial

import jax
import jax.numpy as jnp
from jax.experimental import pallas as pl
from jax.experimental.pallas import tpu as pltpu


def cnn_kernel(x_ref, w_ref, b_ref, rw_ref, o_ref, *, K, L, Bt):
    # x_ref : VMEM (T, E)      zero-padded flattened batch tile (T >= Bt*L + K-1)
    # w_ref : VMEM (K*E, Hp)   im2col conv weight, H zero-padded to 128 lanes
    # b_ref : VMEM (1, Hp)     bias
    # rw_ref: VMEM (Bt*L, 1)   per-row weight = (t < L_out) / length[b]
    # o_ref : VMEM (Bt, Hp)    per-batch masked mean
    N = Bt * L
    Hp = w_ref.shape[1]

    # im2col LHS: tap k is a static slice of the padded tile (no rolled copies).
    # Valid for VALID / stride-1 conv: rows past position L_out-1 (which read
    # padding or the next sequence) are zeroed by rw_ref below.
    lhs = jnp.concatenate([x_ref[pl.ds(k, N), :] for k in range(K)], axis=1)  # (N, K*E)

    acc = jnp.dot(lhs, w_ref[...],
                  preferred_element_type=jnp.float32,
                  precision=jax.lax.Precision.HIGHEST)                        # (N, Hp)

    # Dropout(p=0.1) is the identity in eval mode.
    # TODO(synk): training-mode dropout would need pltpu.prng_seed/prng_random_bits.
    states = jnp.tanh(acc + b_ref[...])                                       # (N, Hp)

    # Fused valid-position mask and 1/length: one vmul on the big tensor.
    weighted = states * rw_ref[...]                                           # (N, Hp)

    # Per-batch sum over the L positions.
    o_ref[...] = jnp.sum(weighted.reshape(Bt, L, Hp), axis=1).astype(o_ref.dtype)


def prepare_params(w_torch, b_torch):
    """One-time weight prep (hoisted out of the per-call forward path).
    w_torch: (H, E, K) Conv1d weight, b_torch: (H,) bias."""
    H, E, K = w_torch.shape
    Hp = ((H + 127) // 128) * 128
    # (H, E, K) -> (K, E, H) -> (K*E, H), row index = k*E + e; pad H -> Hp lanes.
    w_im2col = jnp.transpose(w_torch, (2, 1, 0)).reshape(K * E, H)
    w_im2col = jnp.pad(w_im2col, ((0, 0), (0, Hp - H)))
    b_pad = jnp.pad(b_torch, (0, Hp - H)).reshape(1, Hp)
    return w_im2col, b_pad


def _pick_bt(B, L):
    """Batch-tile size: multiple grid steps (pipelining + v7x 2-TC sharding)
    when B allows, Bt a multiple of 8 with B % Bt == 0, and Bt*L capped so the
    f32 temporaries (~3 * Bt*L * 128 * 4 B) stay well under v7x scoped VMEM."""
    if B < 16:
        return B
    cap = max(8, min(B // 2, max(8, ((8192 // max(L, 1)) // 8) * 8)))
    for bt in range(cap - cap % 8, 7, -8):
        if B % bt == 0:
            return bt
    return B  # no suitable multiple-of-8 divisor: single full-batch step


@partial(jax.jit, static_argnames=("hidden_dim", "kernel_size"))
def cnn_forward(x, lengths, rev, w_im2col, b_pad, *, hidden_dim, kernel_size):
    """x: (B, L, E) f32, lengths: (B,) i32, rev: (B,) i32 permutation,
    w_im2col/b_pad from prepare_params().  Returns (B, H) f32."""
    B, L, E = x.shape
    K = int(kernel_size)
    H = int(hidden_dim)
    KE, Hp = w_im2col.shape
    assert KE == K * E
    L_out = L - K + 1

    Bt = _pick_bt(B, L)
    assert B % Bt == 0, "batch tile must divide B"
    G = B // Bt
    N = Bt * L
    # Pad each batch tile with >= K-1 zero rows (rounded to a sublane multiple)
    # so the K tap slices never leave the tile.
    T = ((N + K - 1 + 7) // 8) * 8

    xg = x.reshape(G, N, E)
    xg = jnp.pad(xg, ((0, 0), (0, T - N), (0, 0)))
    xf = xg.reshape(G * T, E)

    # Per-row weight: (t < L_out) / length[b]  (mask + reciprocal fused).
    mask = (jnp.arange(L) < L_out).astype(jnp.float32)          # (L,)
    inv_len = 1.0 / lengths.astype(jnp.float32)                 # (B,)
    rw = (inv_len[:, None] * mask[None, :]).reshape(B * L, 1)   # (B*L, 1)

    kern = partial(cnn_kernel, K=K, L=L, Bt=Bt)
    means = pl.pallas_call(
        kern,
        out_shape=jax.ShapeDtypeStruct((B, Hp), jnp.float32),
        grid=(G,),
        in_specs=[
            pl.BlockSpec((T, E), lambda i: (i, 0)),
            pl.BlockSpec((KE, Hp), lambda i: (0, 0)),
            pl.BlockSpec((1, Hp), lambda i: (0, 0)),
            pl.BlockSpec((N, 1), lambda i: (i, 0)),
        ],
        out_specs=pl.BlockSpec((Bt, Hp), lambda i: (i, 0)),
        compiler_params=pltpu.CompilerParams(dimension_semantics=("parallel",)),
    )(xf, w_im2col, b_pad, rw)

    means = means[:, :H]
    return means[rev, :]   # tiny (B, H) gather; done in the wrapper


if __name__ == "__main__":
    # Small shapes consistent with the module: batch=2, seq=16, emb=8,
    # hidden_dim=32, kernel_size=3.
    B, L, E, H, K = 2, 16, 8, 32, 3

    key = jax.random.PRNGKey(0)
    k1, k2, k3 = jax.random.split(key, 3)
    x = jax.random.normal(k1, (B, L, E), jnp.float32)
    w_torch = jax.random.normal(k2, (H, E, K), jnp.float32) * 0.1   # Conv1d weight (out, in, K)
    b_torch = jax.random.normal(k3, (H,), jnp.float32) * 0.1        # Conv1d bias (out,)

    lengths = jnp.array([13, 16], jnp.int32)    # sequence lengths
    rev = jnp.array([1, 0], jnp.int32)          # batch re-ordering indices

    w_im2col, b_pad = prepare_params(w_torch, b_torch)   # hoisted, one-time
    out = cnn_forward(x, lengths, rev, w_im2col, b_pad,
                      hidden_dim=H, kernel_size=K)
    out = jax.block_until_ready(out)

    # Plain-JAX reference (mirrors the PyTorch forward in eval mode).
    xt = jnp.transpose(x, (0, 2, 1))                                # (B, E, L)
    conv = jax.lax.conv_general_dilated(
        xt, w_torch, window_strides=(1,), padding="VALID",
        dimension_numbers=("NCH", "OIH", "NCH"),
        precision=jax.lax.Precision.HIGHEST,
    ) + b_torch[None, :, None]                                      # (B, H, L_out)
    states = jnp.tanh(conv)
    states_mean = jnp.sum(states, axis=2) / lengths.astype(jnp.float32)[:, None]
    ref = states_mean[rev, :]

    # Kernel matmul runs at HIGHEST precision, so tight f32 parity is expected.
    assert jnp.allclose(out, ref, atol=1e-4, rtol=1e-4), (out, ref)
    print("KERNEL_OK")
</pallas_src>

<mosaic_0001>
module attributes {stable_mosaic.version = 11 : i64} {
  func.func @cnn_kernel(%arg0: i32, %arg1: memref<40x8xf32, #tpu.memory_space<vmem>>, %arg2: memref<24x128xf32, #tpu.memory_space<vmem>>, %arg3: memref<1x128xf32, #tpu.memory_space<vmem>>, %arg4: memref<32x1xf32, #tpu.memory_space<vmem>>, %arg5: memref<2x128xf32, #tpu.memory_space<vmem>>) attributes {dimension_semantics = [#tpu.dimension_semantics<parallel>], iteration_bounds = array<i64: 1>, scalar_prefetch = 0 : i64, scratch_operands = 0 : i64, tpu.core_type = #tpu.core_type<tc>, window_params = [{transform_indices = @transform_0, window_bounds = array<i64: 40, 8>}, {pipeline_mode = #tpu.pipeline_mode<synchronous>, transform_indices = @transform_1, window_bounds = array<i64: 24, 128>}, {pipeline_mode = #tpu.pipeline_mode<synchronous>, transform_indices = @transform_2, window_bounds = array<i64: 1, 128>}, {transform_indices = @transform_3, window_bounds = array<i64: 32, 1>}, {transform_indices = @transform_4, window_bounds = array<i64: 2, 128>}]} {
    %c0 = arith.constant 0 : index
    %c0_0 = arith.constant 0 : index
    %0 = vector.load %arg1[%c0, %c0_0] : memref<40x8xf32, #tpu.memory_space<vmem>>, vector<32x8xf32>
    %c1 = arith.constant 1 : index
    %c0_1 = arith.constant 0 : index
    %1 = vector.load %arg1[%c1, %c0_1] : memref<40x8xf32, #tpu.memory_space<vmem>>, vector<32x8xf32>
    %c2 = arith.constant 2 : index
    %c0_2 = arith.constant 0 : index
    %2 = vector.load %arg1[%c2, %c0_2] : memref<40x8xf32, #tpu.memory_space<vmem>>, vector<32x8xf32>
    %3 = tpu.concatenate %0, %1, %2 in 1 : vector<32x8xf32>, vector<32x8xf32>, vector<32x8xf32> -> vector<32x24xf32>
    %c0_3 = arith.constant 0 : index
    %c0_4 = arith.constant 0 : index
    %4 = vector.load %arg2[%c0_3, %c0_4] : memref<24x128xf32, #tpu.memory_space<vmem>>, vector<24x128xf32>
    %cst = arith.constant dense<0.000000e+00> : vector<32x128xf32>
    %5 = tpu.matmul %3, %4, %cst {dimension_numbers = #tpu.dot_dimension_numbers<[1], [0], [0], [1], [0, 0, 1, 1], [], []>, precision = #tpu.contract_precision<fp32>} : vector<32x24xf32>, vector<24x128xf32>, vector<32x128xf32> -> vector<32x128xf32>
    %c0_5 = arith.constant 0 : index
    %c0_6 = arith.constant 0 : index
    %6 = vector.load %arg3[%c0_5, %c0_6] : memref<1x128xf32, #tpu.memory_space<vmem>>, vector<1x128xf32>
    %7 = vector.broadcast %6 : vector<1x128xf32> to vector<32x128xf32>
    %8 = arith.addf %5, %7 : vector<32x128xf32>
    %9 = math.tanh %8 : vector<32x128xf32>
    %c0_7 = arith.constant 0 : index
    %c0_8 = arith.constant 0 : index
    %10 = vector.load %arg4[%c0_7, %c0_8] : memref<32x1xf32, #tpu.memory_space<vmem>>, vector<32x1xf32>
    %11 = vector.broadcast %10 : vector<32x1xf32> to vector<32x128xf32>
    %12 = arith.mulf %9, %11 : vector<32x128xf32>
    %13 = vector.shape_cast %12 : vector<32x128xf32> to vector<2x16x128xf32>
    %cst_9 = arith.constant dense<0.000000e+00> : vector<2x128xf32>
    %14 = vector.multi_reduction <add>, %13, %cst_9 [1] : vector<2x16x128xf32> to vector<2x128xf32>
    %c0_10 = arith.constant 0 : index
    %c0_11 = arith.constant 0 : index
    %15 = vector.load %arg5[%c0_10, %c0_11] : memref<2x128xf32, #tpu.memory_space<vmem>>, vector<2x128xf32>
    tpu.vector_store %arg5[%c0_10, %c0_11], %14 {strides = array<i32>} : memref<2x128xf32, #tpu.memory_space<vmem>>, vector<2x128xf32>,
    return
  }
  func.func @transform_0(%arg0: i32) -> (i32, i32) {
    %c0_i32 = arith.constant 0 : i32
    %c0_i32_0 = arith.constant 0 : i32
    return %arg0, %c0_i32 : i32, i32
  }
  func.func @transform_1(%arg0: i32) -> (i32, i32) {
    %c0_i32 = arith.constant 0 : i32
    %c0_i32_0 = arith.constant 0 : i32
    %c0_i32_1 = arith.constant 0 : i32
    return %c0_i32, %c0_i32_0 : i32, i32
  }
  func.func @transform_2(%arg0: i32) -> (i32, i32) {
    %c0_i32 = arith.constant 0 : i32
    %c0_i32_0 = arith.constant 0 : i32
    %c0_i32_1 = arith.constant 0 : i32
    return %c0_i32, %c0_i32_0 : i32, i32
  }
  func.func @transform_3(%arg0: i32) -> (i32, i32) {
    %c0_i32 = arith.constant 0 : i32
    %c0_i32_0 = arith.constant 0 : i32
    return %arg0, %c0_i32 : i32, i32
  }
  func.func @transform_4(%arg0: i32) -> (i32, i32) {
    %c0_i32 = arith.constant 0 : i32
    %c0_i32_0 = arith.constant 0 : i32
    return %arg0, %c0_i32 : i32, i32
  }
}

</mosaic_0001>

<llo_original>
// kernel: cnn_forward.1
$region0: #{cnn_forward.1}
  #allocation0 [shape = 'u32[]', space=smem, size = 0x4, offset = 0x4, fixed_abs, tag = 'smem constant byte address 0x4 - core index']
  #allocation1 [shape = 'u32[144,128]{1,0:T(1,128)}', space=vmem, size = 0x12000, scoped, tag = 'internal scratch']
  %s0 = inlined_call_operand.vmem [shape: f32[40,8], index: 0, kind: input, shape index: {}]
  %s1 = inlined_call_operand.vmem [shape: f32[24,128], index: 1, kind: input, shape index: {}]
  %s2 = inlined_call_operand.vmem [shape: f32[1,128], index: 2, kind: input, shape index: {}]
  %s3 = inlined_call_operand.vmem [shape: f32[32,1], index: 3, kind: input, shape index: {}]
  %s4 = inlined_call_operand.vmem [shape: f32[2,128], index: 4, kind: output, shape index: {}]
  %s5 = sld [smem:[#allocation0]]
  $region26: #{cnn_forward.1} parent=0
    _
  %s7 = ssub.s32 1, %s5
  %s8 = scalar_select 0, %s7, %s5
  // Predicated region
  $region2: #{cnn_forward.1} parent=0 // pred_check
    _
  $region3: #{cnn_forward.1} parent=0 // pred_check_branch
    %10 = sbr.rel (0) target = $region5
  $region4: #{cnn_forward.1} parent=0 // pred_region
    _
  $region5: #{cnn_forward.1} parent=0 // pred_fallthru
    _
  // Predicated region
  $region6: #{cnn_forward.1} parent=0 // pred_check
    _
  $region7: #{cnn_forward.1} parent=0 // pred_check_branch
    %12 = sbr.rel (0) target = $region9
  $region8: #{cnn_forward.1} parent=0 // pred_region
    _
  $region9: #{cnn_forward.1} parent=0 // pred_fallthru
    _
  // Predicated region
  $region10: #{cnn_forward.1} parent=0 // pred_check
    _
  $region11: #{cnn_forward.1} parent=0 // pred_check_branch
    %14 = sbr.rel (0) target = $region13
  $region12: #{cnn_forward.1} parent=0 // pred_region
    _
  $region13: #{cnn_forward.1} parent=0 // pred_fallthru
    _
  // Predicated region
  $region14: #{cnn_forward.1} parent=0 // pred_check
    _
  $region15: #{cnn_forward.1} parent=0 // pred_check_branch
    %16 = sbr.rel (0) target = $region17
  $region16: #{cnn_forward.1} parent=0 // pred_region
    _
  $region17: #{cnn_forward.1} parent=0 // pred_fallthru
    _
  %v17 = vld [vmem:[%s0] sm:$0xff]
  %v18 = vld [vmem:[%s0 + $0x8] sm:$0xff]
  %v19 = vld [vmem:[%s0 + $0x10] sm:$0xff]
  %v20 = vld [vmem:[%s0 + $0x18] sm:$0xff]
  %v21 = vld [vmem:[%s0 + $0x1] sm:$0xff]
  %v22 = vld [vmem:[%s0 + $0x9] sm:$0xff]
  %v23 = vld [vmem:[%s0 + $0x11] sm:$0xff]
  %v24 = vld [vmem:[%s0 + $0x19] sm:$0xff]
  %v25 = vld [vmem:[%s0 + $0x2] sm:$0xff]
  %v26 = vld [vmem:[%s0 + $0xa] sm:$0xff]
  %v27 = vld [vmem:[%s0 + $0x12] sm:$0xff]
  %v28 = vld [vmem:[%s0 + $0x1a] sm:$0xff]
  %33 = vrot.lane.b32.xlu0 %v21, 8
  %v34 = vpop.permute.xlu0 %33
  %35 = vrot.lane.b32.xlu0 %v22, 8
  %v36 = vpop.permute.xlu0 %35
  %37 = vrot.lane.b32.xlu0 %v23, 8
  %v38 = vpop.permute.xlu0 %37
  %39 = vrot.lane.b32.xlu0 %v24, 8
  %v40 = vpop.permute.xlu0 %39
  %49 = vrot.lane.b32.xlu0 %v25, 16
  %v50 = vpop.permute.xlu0 %49
  %51 = vrot.lane.b32.xlu0 %v26, 16
  %v52 = vpop.permute.xlu0 %51
  %53 = vrot.lane.b32.xlu0 %v27, 16
  %v54 = vpop.permute.xlu0 %53
  %55 = vrot.lane.b32.xlu0 %v28, 16
  %v56 = vpop.permute.xlu0 %55
  %vm61 = vcmask 64512
  %v62 = vsel %vm61, %v17, %v34
  %v63 = vsel %vm61, %v18, %v36
  %v64 = vsel %vm61, %v19, %v38
  %v65 = vsel %vm61, %v20, %v40
  %vm66 = vcmask 130048
  %v67 = vsel %vm66, %v62, %v50
  %v68 = vsel %vm66, %v63, %v52
  %v69 = vsel %vm66, %v64, %v54
  %v70 = vsel %vm66, %v65, %v56
  %v71 = vld [vmem:[%s1] sm:$0xff]
  %v72 = vld [vmem:[%s1 + $0x8] sm:$0xff]
  %v73 = vld [vmem:[%s1 + $0x10] sm:$0xff]
  %v74 = vld [vmem:[%s2] sm:$0x1]
  %v76 = vlaneseq
  %v77 = vshrl.u32 %v76, 7
  %v78 = vsub.s32 0, %v77
  %v79 = vrot.slane %v74, %v78
  %vm81 = vcmask 195584
  %v83 = vsel %vm81, %v67, 0
  %v86 = vsel %vm81, %v68, 0
  %v89 = vsel %vm81, %v69, 0
  %v92 = vsel %vm81, %v70, 0
  %94 = vmatprep.subr.mxu0 0.0
  %v95 = vand.u32 %v71, 4294901760
  %96 = vmatpush1.msra.mxu0 %v95
  %97 = vmatprep.subr.mxu0 0.0
  %v98 = vand.u32 %v72, 4294901760
  %99 = vmatpush1.msra.mxu0 %v98
  %100 = vmatprep.subr.mxu0 0.0
  %v101 = vand.u32 %v73, 4294901760
  %102 = vmatpush1.msra.mxu0 %v101
  %103 = vmatprep.subr.mxu0 0.0
  %104 = vmatpush1.msra.mxu0 0.0
  %105 = vmatprep.subr.mxu0 0.0
  %106 = vmatpush1.msra.mxu0 0.0
  %107 = vmatprep.subr.mxu0 0.0
  %108 = vmatpush1.msra.mxu0 0.0
  %109 = vmatprep.subr.mxu0 0.0
  %110 = vmatpush1.msra.mxu0 0.0
  %111 = vmatprep.subr.mxu0 0.0
  %112 = vmatpush1.msra.mxu0 0.0
  %113 = vmatprep.subr.mxu0 0.0
  %114 = vmatpush1.msra.mxu0 0.0
  %115 = vmatprep.subr.mxu0 0.0
  %116 = vmatpush1.msra.mxu0 0.0
  %117 = vmatprep.subr.mxu0 0.0
  %118 = vmatpush1.msra.mxu0 0.0
  %119 = vmatprep.subr.mxu0 0.0
  %120 = vmatpush1.msra.mxu0 0.0
  %121 = vmatprep.subr.mxu0 0.0
  %122 = vmatpush1.msra.mxu0 0.0
  %123 = vmatprep.subr.mxu0 0.0
  %124 = vmatpush1.msra.mxu0 0.0
  %125 = vmatprep.subr.mxu0 0.0
  %126 = vmatpush1.msra.mxu0 0.0
  %127 = vmatprep.subr.mxu0 0.0
  %128 = vmatpush1.msra.mxu0 0.0
  %129 = vmatprep.subr.mxu0 0.0
  %130 = vmatpush1.msra.mxu0 0.0
  %131 = vmatprep.subr.mxu0 0.0
  %132 = vmatpush1.msra.mxu0 0.0
  %133 = vmatprep.subr.mxu0 0.0
  %134 = vmatpush1.msra.mxu0 0.0
  %135 = vmatprep.subr.mxu0 0.0
  %136 = vmatpush1.msra.mxu0 0.0
  %137 = vmatprep.subr.mxu0 0.0
  %138 = vmatpush1.msra.mxu0 0.0
  %139 = vmatprep.subr.mxu0 0.0
  %140 = vmatpush1.msra.mxu0 0.0
  %141 = vmatprep.subr.mxu0 0.0
  %142 = vmatpush1.msra.mxu0 0.0
  %143 = vmatprep.subr.mxu0 0.0
  %144 = vmatpush1.msra.mxu0 0.0
  %145 = vmatprep.subr.mxu0 0.0
  %146 = vmatpush1.msra.mxu0 0.0
  %147 = vmatprep.subr.mxu0 0.0
  %148 = vmatpush1.msra.mxu0 0.0
  %149 = vmatprep.subr.mxu0 0.0
  %150 = vmatpush1.msra.mxu0 0.0
  %151 = vmatprep.subr.mxu0 0.0
  %152 = vmatpush1.msra.mxu0 0.0
  %153 = vmatprep.subr.mxu0 0.0
  %154 = vmatpush1.msra.mxu0 0.0
  %155 = vmatprep.subr.mxu0 0.0
  %156 = vmatpush1.msra.mxu0 0.0
  %157 = vmatprep.subr.mxu0 0.0
  %158 = vmatpush1.msra.mxu0 0.0
  %159 = vmatprep.subr.mxu0 0.0
  %160 = vmatpush1.msra.mxu0 0.0
  %161 = vmatprep.mubr.f32.mxu0 0.0
  %v162 = vand.u32 %v83, 4294901760
  %v163 = vsub.f32 %v83, %v162
  %v164 = vand.u32 %v163, 4294901760
  %v165 = vsub.f32 %v163, %v164
  %v166 = vand.u32 %v165, 4294901760
  %167 = vmatmul.mubr.f32.gmra.mrb[0].mxu0 %v166
  %v168 = vpop.f32.mrb[0].mxu0
  %v169 = vadd.f32 %v79, %v168
  %v170 = vpop.f32.mrb[0].mxu0
  %171 = vmatprep.mubr.f32.mxu0 0.0
  %v172 = vand.u32 %v86, 4294901760
  %v173 = vsub.f32 %v86, %v172
  %v174 = vand.u32 %v173, 4294901760
  %v175 = vsub.f32 %v173, %v174
  %v176 = vand.u32 %v175, 4294901760
  %177 = vmatmul.mubr.f32.gmra.mrb[0].mxu0 %v176
  %v178 = vpop.f32.mrb[0].mxu0
  %v179 = vadd.f32 %v79, %v178
  %v180 = vpop.f32.mrb[0].mxu0
  %181 = vmatprep.mubr.f32.mxu0 0.0
  %v182 = vand.u32 %v89, 4294901760
  %v183 = vsub.f32 %v89, %v182
  %v184 = vand.u32 %v183, 4294901760
  %v185 = vsub.f32 %v183, %v184
  %v186 = vand.u32 %v185, 4294901760
  %187 = vmatmul.mubr.f32.gmra.mrb[0].mxu0 %v186
  %v188 = vpop.f32.mrb[0].mxu0
  %v189 = vadd.f32 %v79, %v188
  %v190 = vpop.f32.mrb[0].mxu0
  %191 = vmatprep.mubr.f32.mxu0 0.0
  %v192 = vand.u32 %v92, 4294901760
  %v193 = vsub.f32 %v92, %v192
  %v194 = vand.u32 %v193, 4294901760
  %v195 = vsub.f32 %v193, %v194
  %v196 = vand.u32 %v195, 4294901760
  %197 = vmatmul.mubr.f32.gmra.mrb[0].mxu0 %v196
  %v198 = vpop.f32.mrb[0].mxu0
  %v199 = vadd.f32 %v79, %v198
  %v200 = vpop.f32.mrb[0].mxu0
  %201 = vdwg.mxu0
  %202 = vmatprep.subr.mxu0 0.0
  %v203 = vand.u32 %v71, 4294901760
  %v204 = vsub.f32 %v71, %v203
  %v205 = vand.u32 %v204, 4294901760
  %v206 = vsub.f32 %v204, %v205
  %v207 = vand.u32 %v206, 4294901760
  %208 = vmatpush1.msra.mxu0 %v207
  %209 = vmatprep.subr.mxu0 0.0
  %v210 = vand.u32 %v72, 4294901760
  %v211 = vsub.f32 %v72, %v210
  %v212 = vand.u32 %v211, 4294901760
  %v213 = vsub.f32 %v211, %v212
  %v214 = vand.u32 %v213, 4294901760
  %215 = vmatpush1.msra.mxu0 %v214
  %216 = vmatprep.subr.mxu0 0.0
  %v217 = vand.u32 %v73, 4294901760
  %v218 = vsub.f32 %v73, %v217
  %v219 = vand.u32 %v218, 4294901760
  %v220 = vsub.f32 %v218, %v219
  %v221 = vand.u32 %v220, 4294901760
  %222 = vmatpush1.msra.mxu0 %v221
  %223 = vmatprep.subr.mxu0 0.0
  %224 = vmatpush1.msra.mxu0 0.0
  %225 = vmatprep.subr.mxu0 0.0
  %226 = vmatpush1.msra.mxu0 0.0
  %227 = vmatprep.subr.mxu0 0.0
  %228 = vmatpush1.msra.mxu0 0.0
  %229 = vmatprep.subr.mxu0 0.0
  %230 = vmatpush1.msra.mxu0 0.0
  %231 = vmatprep.subr.mxu0 0.0
  %232 = vmatpush1.msra.mxu0 0.0
  %233 = vmatprep.subr.mxu0 0.0
  %234 = vmatpush1.msra.mxu0 0.0
  %235 = vmatprep.subr.mxu0 0.0
  %236 = vmatpush1.msra.mxu0 0.0
  %237 = vmatprep.subr.mxu0 0.0
  %238 = vmatpush1.msra.mxu0 0.0
  %239 = vmatprep.subr.mxu0 0.0
  %240 = vmatpush1.msra.mxu0 0.0
  %241 = vmatprep.subr.mxu0 0.0
  %242 = vmatpush1.msra.mxu0 0.0
  %243 = vmatprep.subr.mxu0 0.0
  %244 = vmatpush1.msra.mxu0 0.0
  %245 = vmatprep.subr.mxu0 0.0
  %246 = vmatpush1.msra.mxu0 0.0
  %247 = vmatprep.subr.mxu0 0.0
  %248 = vmatpush1.msra.mxu0 0.0
  %249 = vmatprep.subr.mxu0 0.0
  %250 = vmatpush1.msra.mxu0 0.0
  %251 = vmatprep.subr.mxu0 0.0
  %252 = vmatpush1.msra.mxu0 0.0
  %253 = vmatprep.subr.mxu0 0.0
  %254 = vmatpush1.msra.mxu0 0.0
  %255 = vmatprep.subr.mxu0 0.0
  %256 = vmatpush1.msra.mxu0 0.0
  %257 = vmatprep.subr.mxu0 0.0
  %258 = vmatpush1.msra.mxu0 0.0
  %259 = vmatprep.subr.mxu0 0.0
  %260 = vmatpush1.msra.mxu0 0.0
  %261 = vmatprep.subr.mxu0 0.0
  %262 = vmatpush1.msra.mxu0 0.0
  %263 = vmatprep.subr.mxu0 0.0
  %264 = vmatpush1.msra.mxu0 0.0
  %265 = vmatprep.subr.mxu0 0.0
  %266 = vmatpush1.msra.mxu0 0.0
  %267 = vmatprep.subr.mxu0 0.0
  %268 = vmatpush1.msra.mxu0 0.0
  %269 = vmatprep.subr.mxu0 0.0
  %270 = vmatpush1.msra.mxu0 0.0
  %271 = vmatprep.subr.mxu0 0.0
  %272 = vmatpush1.msra.mxu0 0.0
  %273 = vmatprep.subr.mxu0 0.0
  %274 = vmatpush1.msra.mxu0 0.0
  %275 = vmatprep.subr.mxu0 0.0
  %276 = vmatpush1.msra.mxu0 0.0
  %277 = vmatprep.subr.mxu0 0.0
  %278 = vmatpush1.msra.mxu0 0.0
  %279 = vmatprep.subr.mxu0 0.0
  %280 = vmatpush1.msra.mxu0 0.0
  %281 = vmatprep.mubr.f32.mxu0 0.0
  %v282 = vand.u32 %v83, 4294901760
  %283 = vmatmul.mubr.f32.gmra.mrb[0].mxu0 %v282
  %v284 = vpop.f32.mrb[0].mxu0
  %v285 = vadd.f32 %v169, %v284
  %v286 = vpop.f32.mrb[0].mxu0
  %287 = vmatprep.mubr.f32.mxu0 0.0
  %v288 = vand.u32 %v86, 4294901760
  %289 = vmatmul.mubr.f32.gmra.mrb[0].mxu0 %v288
  %v290 = vpop.f32.mrb[0].mxu0
  %v291 = vadd.f32 %v179, %v290
  %v292 = vpop.f32.mrb[0].mxu0
  %293 = vmatprep.mubr.f32.mxu0 0.0
  %v294 = vand.u32 %v89, 4294901760
  %295 = vmatmul.mubr.f32.gmra.mrb[0].mxu0 %v294
  %v296 = vpop.f32.mrb[0].mxu0
  %v297 = vadd.f32 %v189, %v296
  %v298 = vpop.f32.mrb[0].mxu0
  %299 = vmatprep.mubr.f32.mxu0 0.0
  %v300 = vand.u32 %v92, 4294901760
  %301 = vmatmul.mubr.f32.gmra.mrb[0].mxu0 %v300
  %v302 = vpop.f32.mrb[0].mxu0
  %v303 = vadd.f32 %v199, %v302
  %v304 = vpop.f32.mrb[0].mxu0
  %305 = vdwg.mxu0
  %306 = vmatprep.subr.mxu0 0.0
  %v307 = vand.u32 %v71, 4294901760
  %v308 = vsub.f32 %v71, %v307
  %309 = vmatpush1.msra.mxu0 %v308
  %310 = vmatprep.subr.mxu0 0.0
  %v311 = vand.u32 %v72, 4294901760
  %v312 = vsub.f32 %v72, %v311
  %313 = vmatpush1.msra.mxu0 %v312
  %314 = vmatprep.subr.mxu0 0.0
  %v315 = vand.u32 %v73, 4294901760
  %v316 = vsub.f32 %v73, %v315
  %317 = vmatpush1.msra.mxu0 %v316
  %318 = vmatprep.subr.mxu0 0.0
  %319 = vmatpush1.msra.mxu0 0.0
  %320 = vmatprep.subr.mxu0 0.0
  %321 = vmatpush1.msra.mxu0 0.0
  %322 = vmatprep.subr.mxu0 0.0
  %323 = vmatpush1.msra.mxu0 0.0
  %324 = vmatprep.subr.mxu0 0.0
  %325 = vmatpush1.msra.mxu0 0.0
  %326 = vmatprep.subr.mxu0 0.0
  %327 = vmatpush1.msra.mxu0 0.0
  %328 = vmatprep.subr.mxu0 0.0
  %329 = vmatpush1.msra.mxu0 0.0
  %330 = vmatprep.subr.mxu0 0.0
  %331 = vmatpush1.msra.mxu0 0.0
  %332 = vmatprep.subr.mxu0 0.0
  %333 = vmatpush1.msra.mxu0 0.0
  %334 = vmatprep.subr.mxu0 0.0
  %335 = vmatpush1.msra.mxu0 0.0
  %336 = vmatprep.subr.mxu0 0.0
  %337 = vmatpush1.msra.mxu0 0.0
  %338 = vmatprep.subr.mxu0 0.0
  %339 = vmatpush1.msra.mxu0 0.0
  %340 = vmatprep.subr.mxu0 0.0
  %341 = vmatpush1.msra.mxu0 0.0
  %342 = vmatprep.subr.mxu0 0.0
  %343 = vmatpush1.msra.mxu0 0.0
  %344 = vmatprep.subr.mxu0 0.0
  %345 = vmatpush1.msra.mxu0 0.0
  %346 = vmatprep.subr.mxu0 0.0
  %347 = vmatpush1.msra.mxu0 0.0
  %348 = vmatprep.subr.mxu0 0.0
  %349 = vmatpush1.msra.mxu0 0.0
  %350 = vmatprep.subr.mxu0 0.0
  %351 = vmatpush1.msra.mxu0 0.0
  %352 = vmatprep.subr.mxu0 0.0
  %353 = vmatpush1.msra.mxu0 0.0
  %354 = vmatprep.subr.mxu0 0.0
  %355 = vmatpush1.msra.mxu0 0.0
  %356 = vmatprep.subr.mxu0 0.0
  %357 = vmatpush1.msra.mxu0 0.0
  %358 = vmatprep.subr.mxu0 0.0
  %359 = vmatpush1.msra.mxu0 0.0
  %360 = vmatprep.subr.mxu0 0.0
  %361 = vmatpush1.msra.mxu0 0.0
  %362 = vmatprep.subr.mxu0 0.0
  %363 = vmatpush1.msra.mxu0 0.0
  %364 = vmatprep.subr.mxu0 0.0
  %365 = vmatpush1.msra.mxu0 0.0
  %366 = vmatprep.subr.mxu0 0.0
  %367 = vmatpush1.msra.mxu0 0.0
  %368 = vmatprep.subr.mxu0 0.0
  %369 = vmatpush1.msra.mxu0 0.0
  %370 = vmatprep.subr.mxu0 0.0
  %371 = vmatpush1.msra.mxu0 0.0
  %372 = vmatprep.subr.mxu0 0.0
  %373 = vmatpush1.msra.mxu0 0.0
  %374 = vmatprep.subr.mxu0 0.0
  %375 = vmatpush1.msra.mxu0 0.0
  %376 = vmatprep.mubr.f32.mxu0 0.0
  %v377 = vand.u32 %v83, 4294901760
  %v378 = vsub.f32 %v83, %v377
  %379 = vmatmul.mubr.f32.gmra.mrb[0].mxu0 %v378
  %v380 = vpop.f32.mrb[0].mxu0
  %v381 = vadd.f32 %v285, %v380
  %v382 = vpop.f32.mrb[0].mxu0
  %383 = vmatprep.mubr.f32.mxu0 0.0
  %v384 = vand.u32 %v86, 4294901760
  %v385 = vsub.f32 %v86, %v384
  %386 = vmatmul.mubr.f32.gmra.mrb[0].mxu0 %v385
  %v387 = vpop.f32.mrb[0].mxu0
  %v388 = vadd.f32 %v291, %v387
  %v389 = vpop.f32.mrb[0].mxu0
  %390 = vmatprep.mubr.f32.mxu0 0.0
  %v391 = vand.u32 %v89, 4294901760
  %v392 = vsub.f32 %v89, %v391
  %393 = vmatmul.mubr.f32.gmra.mrb[0].mxu0 %v392
  %v394 = vpop.f32.mrb[0].mxu0
  %v395 = vadd.f32 %v297, %v394
  %v396 = vpop.f32.mrb[0].mxu0
  %397 = vmatprep.mubr.f32.mxu0 0.0
  %v398 = vand.u32 %v92, 4294901760
  %v399 = vsub.f32 %v92, %v398
  %400 = vmatmul.mubr.f32.gmra.mrb[0].mxu0 %v399
  %v401 = vpop.f32.mrb[0].mxu0
  %v402 = vadd.f32 %v303, %v401
  %v403 = vpop.f32.mrb[0].mxu0
  %404 = vdwg.mxu0
  %405 = vmatprep.subr.mxu0 0.0
  %v406 = vand.u32 %v71, 4294901760
  %407 = vmatpush1.msra.mxu0 %v406
  %408 = vmatprep.subr.mxu0 0.0
  %v409 = vand.u32 %v72, 4294901760
  %410 = vmatpush1.msra.mxu0 %v409
  %411 = vmatprep.subr.mxu0 0.0
  %v412 = vand.u32 %v73, 4294901760
  %413 = vmatpush1.msra.mxu0 %v412
  %414 = vmatprep.subr.mxu0 0.0
  %415 = vmatpush1.msra.mxu0 0.0
  %416 = vmatprep.subr.mxu0 0.0
  %417 = vmatpush1.msra.mxu0 0.0
  %418 = vmatprep.subr.mxu0 0.0
  %419 = vmatpush1.msra.mxu0 0.0
  %420 = vmatprep.subr.mxu0 0.0
  %421 = vmatpush1.msra.mxu0 0.0
  %422 = vmatprep.subr.mxu0 0.0
  %423 = vmatpush1.msra.mxu0 0.0
  %424 = vmatprep.subr.mxu0 0.0
  %425 = vmatpush1.msra.mxu0 0.0
  %426 = vmatprep.subr.mxu0 0.0
  %427 = vmatpush1.msra.mxu0 0.0
  %428 = vmatprep.subr.mxu0 0.0
  %429 = vmatpush1.msra.mxu0 0.0
  %430 = vmatprep.subr.mxu0 0.0
  %431 = vmatpush1.msra.mxu0 0.0
  %432 = vmatprep.subr.mxu0 0.0
  %433 = vmatpush1.msra.mxu0 0.0
  %434 = vmatprep.subr.mxu0 0.0
  %435 = vmatpush1.msra.mxu0 0.0
  %436 = vmatprep.subr.mxu0 0.0
  %437 = vmatpush1.msra.mxu0 0.0
  %438 = vmatprep.subr.mxu0 0.0
  %439 = vmatpush1.msra.mxu0 0.0
  %440 = vmatprep.subr.mxu0 0.0
  %441 = vmatpush1.msra.mxu0 0.0
  %442 = vmatprep.subr.mxu0 0.0
  %443 = vmatpush1.msra.mxu0 0.0
  %444 = vmatprep.subr.mxu0 0.0
  %445 = vmatpush1.msra.mxu0 0.0
  %446 = vmatprep.subr.mxu0 0.0
  %447 = vmatpush1.msra.mxu0 0.0
  %448 = vmatprep.subr.mxu0 0.0
  %449 = vmatpush1.msra.mxu0 0.0
  %450 = vmatprep.subr.mxu0 0.0
  %451 = vmatpush1.msra.mxu0 0.0
  %452 = vmatprep.subr.mxu0 0.0
  %453 = vmatpush1.msra.mxu0 0.0
  %454 = vmatprep.subr.mxu0 0.0
  %455 = vmatpush1.msra.mxu0 0.0
  %456 = vmatprep.subr.mxu0 0.0
  %457 = vmatpush1.msra.mxu0 0.0
  %458 = vmatprep.subr.mxu0 0.0
  %459 = vmatpush1.msra.mxu0 0.0
  %460 = vmatprep.subr.mxu0 0.0
  %461 = vmatpush1.msra.mxu0 0.0
  %462 = vmatprep.subr.mxu0 0.0
  %463 = vmatpush1.msra.mxu0 0.0
  %464 = vmatprep.subr.mxu0 0.0
  %465 = vmatpush1.msra.mxu0 0.0
  %466 = vmatprep.subr.mxu0 0.0
  %467 = vmatpush1.msra.mxu0 0.0
  %468 = vmatprep.subr.mxu0 0.0
  %469 = vmatpush1.msra.mxu0 0.0
  %470 = vmatprep.subr.mxu0 0.0
  %471 = vmatpush1.msra.mxu0 0.0
  %472 = vmatprep.mubr.f32.mxu0 0.0
  %v473 = vand.u32 %v83, 4294901760
  %v474 = vsub.f32 %v83, %v473
  %v475 = vand.u32 %v474, 4294901760
  %476 = vmatmul.mubr.f32.gmra.mrb[0].mxu0 %v475
  %v477 = vpop.f32.mrb[0].mxu0
  %v478 = vadd.f32 %v381, %v477
  %v479 = vpop.f32.mrb[0].mxu0
  %480 = vmatprep.mubr.f32.mxu0 0.0
  %v481 = vand.u32 %v86, 4294901760
  %v482 = vsub.f32 %v86, %v481
  %v483 = vand.u32 %v482, 4294901760
  %484 = vmatmul.mubr.f32.gmra.mrb[0].mxu0 %v483
  %v485 = vpop.f32.mrb[0].mxu0
  %v486 = vadd.f32 %v388, %v485
  %v487 = vpop.f32.mrb[0].mxu0
  %488 = vmatprep.mubr.f32.mxu0 0.0
  %v489 = vand.u32 %v89, 4294901760
  %v490 = vsub.f32 %v89, %v489
  %v491 = vand.u32 %v490, 4294901760
  %492 = vmatmul.mubr.f32.gmra.mrb[0].mxu0 %v491
  %v493 = vpop.f32.mrb[0].mxu0
  %v494 = vadd.f32 %v395, %v493
  %v495 = vpop.f32.mrb[0].mxu0
  %496 = vmatprep.mubr.f32.mxu0 0.0
  %v497 = vand.u32 %v92, 4294901760
  %v498 = vsub.f32 %v92, %v497
  %v499 = vand.u32 %v498, 4294901760
  %500 = vmatmul.mubr.f32.gmra.mrb[0].mxu0 %v499
  %v501 = vpop.f32.mrb[0].mxu0
  %v502 = vadd.f32 %v402, %v501
  %v503 = vpop.f32.mrb[0].mxu0
  %504 = vdwg.mxu0
  %505 = vmatprep.subr.mxu0 0.0
  %v506 = vand.u32 %v71, 4294901760
  %v507 = vsub.f32 %v71, %v506
  %v508 = vand.u32 %v507, 4294901760
  %509 = vmatpush1.msra.mxu0 %v508
  %510 = vmatprep.subr.mxu0 0.0
  %v511 = vand.u32 %v72, 4294901760
  %v512 = vsub.f32 %v72, %v511
  %v513 = vand.u32 %v512, 4294901760
  %514 = vmatpush1.msra.mxu0 %v513
  %515 = vmatprep.subr.mxu0 0.0
  %v516 = vand.u32 %v73, 4294901760
  %v517 = vsub.f32 %v73, %v516
  %v518 = vand.u32 %v517, 4294901760
  %519 = vmatpush1.msra.mxu0 %v518
  %520 = vmatprep.subr.mxu0 0.0
  %521 = vmatpush1.msra.mxu0 0.0
  %522 = vmatprep.subr.mxu0 0.0
  %523 = vmatpush1.msra.mxu0 0.0
  %524 = vmatprep.subr.mxu0 0.0
  %525 = vmatpush1.msra.mxu0 0.0
  %526 = vmatprep.subr.mxu0 0.0
  %527 = vmatpush1.msra.mxu0 0.0
  %528 = vmatprep.subr.mxu0 0.0
  %529 = vmatpush1.msra.mxu0 0.0
  %530 = vmatprep.subr.mxu0 0.0
  %531 = vmatpush1.msra.mxu0 0.0
  %532 = vmatprep.subr.mxu0 0.0
  %533 = vmatpush1.msra.mxu0 0.0
  %534 = vmatprep.subr.mxu0 0.0
  %535 = vmatpush1.msra.mxu0 0.0
  %536 = vmatprep.subr.mxu0 0.0
  %537 = vmatpush1.msra.mxu0 0.0
  %538 = vmatprep.subr.mxu0 0.0
  %539 = vmatpush1.msra.mxu0 0.0
  %540 = vmatprep.subr.mxu0 0.0
  %541 = vmatpush1.msra.mxu0 0.0
  %542 = vmatprep.subr.mxu0 0.0
  %543 = vmatpush1.msra.mxu0 0.0
  %544 = vmatprep.subr.mxu0 0.0
  %545 = vmatpush1.msra.mxu0 0.0
  %546 = vmatprep.subr.mxu0 0.0
  %547 = vmatpush1.msra.mxu0 0.0
  %548 = vmatprep.subr.mxu0 0.0
  %549 = vmatpush1.msra.mxu0 0.0
  %550 = vmatprep.subr.mxu0 0.0
  %551 = vmatpush1.msra.mxu0 0.0
  %552 = vmatprep.subr.mxu0 0.0
  %553 = vmatpush1.msra.mxu0 0.0
  %554 = vmatprep.subr.mxu0 0.0
  %555 = vmatpush1.msra.mxu0 0.0
  %556 = vmatprep.subr.mxu0 0.0
  %557 = vmatpush1.msra.mxu0 0.0
  %558 = vmatprep.subr.mxu0 0.0
  %559 = vmatpush1.msra.mxu0 0.0
  %560 = vmatprep.subr.mxu0 0.0
  %561 = vmatpush1.msra.mxu0 0.0
  %562 = vmatprep.subr.mxu0 0.0
  %563 = vmatpush1.msra.mxu0 0.0
  %564 = vmatprep.subr.mxu0 0.0
  %565 = vmatpush1.msra.mxu0 0.0
  %566 = vmatprep.subr.mxu0 0.0
  %567 = vmatpush1.msra.mxu0 0.0
  %568 = vmatprep.subr.mxu0 0.0
  %569 = vmatpush1.msra.mxu0 0.0
  %570 = vmatprep.subr.mxu0 0.0
  %571 = vmatpush1.msra.mxu0 0.0
  %572 = vmatprep.subr.mxu0 0.0
  %573 = vmatpush1.msra.mxu0 0.0
  %574 = vmatprep.subr.mxu0 0.0
  %575 = vmatpush1.msra.mxu0 0.0
  %576 = vmatprep.subr.mxu0 0.0
  %577 = vmatpush1.msra.mxu0 0.0
  %578 = vmatprep.mubr.f32.mxu0 0.0
  %v579 = vand.u32 %v83, 4294901760
  %580 = vmatmul.mubr.f32.gmra.mrb[0].mxu0 %v579
  %v581 = vpop.f32.mrb[0].mxu0
  %v582 = vadd.f32 %v478, %v581
  %v583 = vpop.f32.mrb[0].mxu0
  %584 = vmatprep.mubr.f32.mxu0 0.0
  %v585 = vand.u32 %v86, 4294901760
  %586 = vmatmul.mubr.f32.gmra.mrb[0].mxu0 %v585
  %v587 = vpop.f32.mrb[0].mxu0
  %v588 = vadd.f32 %v486, %v587
  %v589 = vpop.f32.mrb[0].mxu0
  %590 = vmatprep.mubr.f32.mxu0 0.0
  %v591 = vand.u32 %v89, 4294901760
  %592 = vmatmul.mubr.f32.gmra.mrb[0].mxu0 %v591
  %v593 = vpop.f32.mrb[0].mxu0
  %v594 = vadd.f32 %v494, %v593
  %v595 = vpop.f32.mrb[0].mxu0
  %596 = vmatprep.mubr.f32.mxu0 0.0
  %v597 = vand.u32 %v92, 4294901760
  %598 = vmatmul.mubr.f32.gmra.mrb[0].mxu0 %v597
  %v599 = vpop.f32.mrb[0].mxu0
  %v600 = vadd.f32 %v502, %v599
  %v601 = vpop.f32.mrb[0].mxu0
  %602 = vdwg.mxu0
  %603 = vmatprep.subr.mxu0 0.0
  %v604 = vand.u32 %v71, 4294901760
  %605 = vmatpush1.msra.mxu0 %v604
  %606 = vmatprep.subr.mxu0 0.0
  %v607 = vand.u32 %v72, 4294901760
  %608 = vmatpush1.msra.mxu0 %v607
  %609 = vmatprep.subr.mxu0 0.0
  %v610 = vand.u32 %v73, 4294901760
  %611 = vmatpush1.msra.mxu0 %v610
  %612 = vmatprep.subr.mxu0 0.0
  %613 = vmatpush1.msra.mxu0 0.0
  %614 = vmatprep.subr.mxu0 0.0
  %615 = vmatpush1.msra.mxu0 0.0
  %616 = vmatprep.subr.mxu0 0.0
  %617 = vmatpush1.msra.mxu0 0.0
  %618 = vmatprep.subr.mxu0 0.0
  %619 = vmatpush1.msra.mxu0 0.0
  %620 = vmatprep.subr.mxu0 0.0
  %621 = vmatpush1.msra.mxu0 0.0
  %622 = vmatprep.subr.mxu0 0.0
  %623 = vmatpush1.msra.mxu0 0.0
  %624 = vmatprep.subr.mxu0 0.0
  %625 = vmatpush1.msra.mxu0 0.0
  %626 = vmatprep.subr.mxu0 0.0
  %627 = vmatpush1.msra.mxu0 0.0
  %628 = vmatprep.subr.mxu0 0.0
  %629 = vmatpush1.msra.mxu0 0.0
  %630 = vmatprep.subr.mxu0 0.0
  %631 = vmatpush1.msra.mxu0 0.0
  %632 = vmatprep.subr.mxu0 0.0
  %633 = vmatpush1.msra.mxu0 0.0
  %634 = vmatprep.subr.mxu0 0.0
  %635 = vmatpush1.msra.mxu0 0.0
  %636 = vmatprep.subr.mxu0 0.0
  %637 = vmatpush1.msra.mxu0 0.0
  %638 = vmatprep.subr.mxu0 0.0
  %639 = vmatpush1.msra.mxu0 0.0
  %640 = vmatprep.subr.mxu0 0.0
  %641 = vmatpush1.msra.mxu0 0.0
  %642 = vmatprep.subr.mxu0 0.0
  %643 = vmatpush1.msra.mxu0 0.0
  %644 = vmatprep.subr.mxu0 0.0
  %645 = vmatpush1.msra.mxu0 0.0
  %646 = vmatprep.subr.mxu0 0.0
  %647 = vmatpush1.msra.mxu0 0.0
  %648 = vmatprep.subr.mxu0 0.0
  %649 = vmatpush1.msra.mxu0 0.0
  %650 = vmatprep.subr.mxu0 0.0
  %651 = vmatpush1.msra.mxu0 0.0
  %652 = vmatprep.subr.mxu0 0.0
  %653 = vmatpush1.msra.mxu0 0.0
  %654 = vmatprep.subr.mxu0 0.0
  %655 = vmatpush1.msra.mxu0 0.0
  %656 = vmatprep.subr.mxu0 0.0
  %657 = vmatpush1.msra.mxu0 0.0
  %658 = vmatprep.subr.mxu0 0.0
  %659 = vmatpush1.msra.mxu0 0.0
  %660 = vmatprep.subr.mxu0 0.0
  %661 = vmatpush1.msra.mxu0 0.0
  %662 = vmatprep.subr.mxu0 0.0
  %663 = vmatpush1.msra.mxu0 0.0
  %664 = vmatprep.subr.mxu0 0.0
  %665 = vmatpush1.msra.mxu0 0.0
  %666 = vmatprep.subr.mxu0 0.0
  %667 = vmatpush1.msra.mxu0 0.0
  %668 = vmatprep.subr.mxu0 0.0
  %669 = vmatpush1.msra.mxu0 0.0
  %670 = vmatprep.mubr.f32.mxu0 0.0
  %v671 = vand.u32 %v83, 4294901760
  %672 = vmatmul.mubr.f32.gmra.mrb[0].mxu0 %v671
  %v673 = vpop.f32.mrb[0].mxu0
  %v674 = vadd.f32 %v582, %v673
  %v675 = vpop.f32.mrb[0].mxu0
  %676 = vmatprep.mubr.f32.mxu0 0.0
  %v677 = vand.u32 %v86, 4294901760
  %678 = vmatmul.mubr.f32.gmra.mrb[0].mxu0 %v677
  %v679 = vpop.f32.mrb[0].mxu0
  %v680 = vadd.f32 %v588, %v679
  %v681 = vpop.f32.mrb[0].mxu0
  %682 = vmatprep.mubr.f32.mxu0 0.0
  %v683 = vand.u32 %v89, 4294901760
  %684 = vmatmul.mubr.f32.gmra.mrb[0].mxu0 %v683
  %v685 = vpop.f32.mrb[0].mxu0
  %v686 = vadd.f32 %v594, %v685
  %v687 = vpop.f32.mrb[0].mxu0
  %688 = vmatprep.mubr.f32.mxu0 0.0
  %v689 = vand.u32 %v92, 4294901760
  %690 = vmatmul.mubr.f32.gmra.mrb[0].mxu0 %v689
  %v691 = vpop.f32.mrb[0].mxu0
  %v692 = vadd.f32 %v600, %v691
  %v693 = vpop.f32.mrb[0].mxu0
  %694 = vdwg.mxu0
  %v695 = vtanh.pop %v674
  %v696 = vtanh.pop %v680
  %v697 = vtanh.pop %v686
  %v698 = vtanh.pop %v692
  %v699 = vld [vmem:[%s3] sm:$0xff]
  %v700 = vld [vmem:[%s3 + $0x8] sm:$0xff]
  %v701 = vld [vmem:[%s3 + $0x10] sm:$0xff]
  %v702 = vld [vmem:[%s3 + $0x18] sm:$0xff]
  %704 = vset.pattern.permute.xlu0 0
  %705 = vperm.xlu0 %704, %v699
  %v706 = vpop.permute.xlu0 %705
  %709 = vset.pattern.permute.xlu0 0
  %710 = vperm.xlu0 %709, %v700
  %v711 = vpop.permute.xlu0 %710
  %714 = vset.pattern.permute.xlu0 0
  %715 = vperm.xlu0 %714, %v701
  %v716 = vpop.permute.xlu0 %715
  %719 = vset.pattern.permute.xlu0 0
  %720 = vperm.xlu0 %719, %v702
  %v721 = vpop.permute.xlu0 %720
  %v723 = vmul.f32 %v695, %v706
  %v724 = vmul.f32 %v696, %v711
  %v725 = vmul.f32 %v697, %v716
  %v726 = vmul.f32 %v698, %v721
  %v727 = vadd.f32 %v723, %v724
  %v728 = vrot.slane %v727, 4
  %v729 = vadd.f32 %v727, %v728
  %v730 = vrot.slane %v729, 2
  %v731 = vadd.f32 %v729, %v730
  %v732 = vrot.slane %v731, 1
  %v733 = vadd.f32 %v731, %v732
  %v734 = vadd.f32 %v725, %v726
  %v735 = vrot.slane %v734, 4
  %v736 = vadd.f32 %v734, %v735
  %v737 = vrot.slane %v736, 2
  %v738 = vadd.f32 %v736, %v737
  %v739 = vrot.slane %v738, 1
  %v740 = vadd.f32 %v738, %v739
  %vm743 = vcmask 1041409
  %v744 = vsel %vm743, %v740, %v733
  %746 = vst [vmem:[%s4] sm:$0x3] %v744
  // Predicated region
  $region18: #{cnn_forward.1} parent=0 // pred_check
    _
  $region19: #{cnn_forward.1} parent=0 // pred_check_branch
    %748 = sbr.rel (0) target = $region21
  $region20: #{cnn_forward.1} parent=0 // pred_region
    _
  $region21: #{cnn_forward.1} parent=0 // pred_fallthru
    _
  // Predicated region
  $region22: #{cnn_forward.1} parent=0 // pred_check
    _
  $region23: #{cnn_forward.1} parent=0 // pred_check_branch
    %750 = sbr.rel (0) target = $region25
  $region24: #{cnn_forward.1} parent=0 // pred_region
    _
  $region25: #{cnn_forward.1} parent=0 // pred_fallthru
    _

</llo_original>
